<compile_context>
chip_gen: v7x
topology: tpu7x:2x2x1
jax: 0.10.0
libtpu: 0.0.40
codegen_flags: <defaults>
</compile_context>

<pallas_src>
import functools

import jax
import jax.numpy as jnp
from jax.experimental import pallas as pl
from jax.experimental.pallas import tpu as pltpu

_LANE = 128
_MIB = 1024 * 1024


def _round_up(x, m):
    return (x + m - 1) // m * m


def _round_down(x, m):
    return (x // m) * m


def _sublane_pack(dtype):
    """Rows per packed sublane group: 8 (4B), 16 (2B), 32 (1B)."""
    return 8 * (4 // jnp.dtype(dtype).itemsize)


def _vmem_budget_bytes():
    """~75% of per-core VMEM (leaves headroom for compiler scratch)."""
    try:
        cap = pltpu.get_tpu_info().vmem_capacity_bytes
    except Exception:
        cap = 64 * _MIB  # conservative: v7x per-TensorCore VMEM
    return int(cap) * 3 // 4


# -----------------------------------------------------------------------------
# Default path: contiguous positions -> blocked copy + scale (pure bandwidth).
# -----------------------------------------------------------------------------
def _copy_scale_kernel(emb_ref, out_ref, *, scale):
    out_ref[...] = (emb_ref[...].astype(jnp.float32) * scale).astype(out_ref.dtype)


def _arange_pos_emb(emb, seq_len, scale):
    """emb[:seq_len] * scale as a streamed copy+scale kernel."""
    _, dim = emb.shape
    itemsize = jnp.dtype(emb.dtype).itemsize
    pack = _sublane_pack(emb.dtype)

    # Size blocks by a ~2 MiB VMEM budget so the ~0.35 us per-grid-step
    # overhead is amortized; keep rows a multiple of the sublane packing.
    target_rows = max(pack, (2 * _MIB) // (dim * itemsize))
    tile = min(_round_down(target_rows, pack), _round_up(seq_len, pack))
    tile = max(tile, pack)
    grid = pl.cdiv(seq_len, tile)

    block_bytes = tile * dim * itemsize
    need = 4 * block_bytes + _MIB           # 2x in + 2x out double-buffers + slack
    vmem_limit = min(_vmem_budget_bytes(), need) if need > 16 * _MIB else None

    return pl.pallas_call(
        functools.partial(_copy_scale_kernel, scale=scale),
        out_shape=jax.ShapeDtypeStruct((seq_len, dim), emb.dtype),
        grid=(grid,),
        in_specs=[pl.BlockSpec((tile, dim), lambda i: (i, 0))],
        out_specs=pl.BlockSpec((tile, dim), lambda i: (i, 0)),
        compiler_params=pltpu.CompilerParams(
            dimension_semantics=("parallel",),
            vmem_limit_bytes=vmem_limit,
        ),
    )(emb)


# -----------------------------------------------------------------------------
# General path: arbitrary positions -> one vectorized gather per tile.
# -----------------------------------------------------------------------------
def _take_gather_kernel(pos_ref, emb_ref, out_ref, *, scale):
    """One vectorized row gather + one full-width lane-dense store per tile."""
    idx = pos_ref[0, 0, :]                           # (tile,) int32, lane-major
    rows = jnp.take(emb_ref[...], idx, axis=0)       # (tile, dim)
    out_ref[...] = (rows.astype(jnp.float32) * scale).astype(out_ref.dtype)


def _onehot_gather_kernel(pos_ref, emb_ref, out_ref, *, scale, n_rows):
    """Exact fallback: one-hot x table on the MXU (HIGHEST precision)."""
    # TODO(synk): chunk n_rows over an extra 'arbitrary' grid axis (bf16
    # one-hot) if this fallback is ever hot on v5e with large tables.
    idx = pos_ref[0, 0, :][:, None]                  # (tile, 1)
    tile = out_ref.shape[0]
    col = jax.lax.broadcasted_iota(jnp.int32, (tile, n_rows), 1)
    onehot = (col == idx).astype(emb_ref.dtype)      # 0/1 exact
    rows = jnp.dot(onehot, emb_ref[...],
                   precision=jax.lax.Precision.HIGHEST,
                   preferred_element_type=jnp.float32)
    out_ref[...] = (rows * scale).astype(out_ref.dtype)


def _gather_pos_emb(pos_flat, emb, scale):
    """emb[pos_flat] * scale -> (n, dim)."""
    max_seq_len, dim = emb.shape
    itemsize = jnp.dtype(emb.dtype).itemsize
    n = pos_flat.shape[0]

    # Clamp so a bad index can never become a silent OOB VMEM read
    # (torch.nn.Embedding would raise; clamping is the safe TPU equivalent).
    idx = jnp.clip(pos_flat.astype(jnp.int32), 0, max_seq_len - 1)

    budget = _vmem_budget_bytes()
    table_bytes = max_seq_len * dim * itemsize       # single-buffered resident table
    # TODO(synk): if table_bytes > budget, switch to a streaming HBM DMA
    # gather instead of the resident table (see module-level TODO).

    # Output tile: ~1 MiB lane-dense stores, multiple of 128 so the lane-major
    # positions block loads as dense vregs; shrink until table + 2x out fits.
    tile = max(_LANE, min(1024, _round_down(_MIB // (dim * itemsize), _LANE)))
    while tile > _LANE and table_bytes + 2 * tile * dim * itemsize + 2 * _MIB > budget:
        tile //= 2

    if n <= tile:
        tile_rows, padded_n, grid = n, n, 1          # single full-extent block
    else:
        tile_rows = tile
        padded_n = _round_up(n, tile_rows)
        grid = padded_n // tile_rows
    if padded_n != n:
        # Pad only the tiny int32 index vector; the (n, dim) output keeps its
        # exact shape and the partial last block is masked by Pallas.
        idx = jnp.pad(idx, (0, padded_n - n))
    pos3d = idx.reshape(grid, 1, tile_rows)          # lane-major positions

    pos_spec = pl.BlockSpec((1, 1, tile_rows), lambda i: (i, 0, 0))
    out_spec = pl.BlockSpec((tile_rows, dim), lambda i: (i, 0))

    vmem_need = (table_bytes + 2 * tile_rows * dim * itemsize
                 + 2 * 8 * tile_rows * 4 + 2 * _MIB)
    vmem_limit = min(budget, vmem_need) if vmem_need > 16 * _MIB else None
    # Small grids: 'arbitrary' avoids both v7x cores DMAing their own full
    # copy of the resident table; large grids: shard across cores.
    semantics = ("parallel",) if grid >= 8 else ("arbitrary",)
    params = pltpu.CompilerParams(
        dimension_semantics=semantics,
        vmem_limit_bytes=vmem_limit,
    )

    def build(table_spec, kernel):
        return pl.pallas_call(
            kernel,
            out_shape=jax.ShapeDtypeStruct((n, dim), emb.dtype),
            grid=(grid,),
            in_specs=[pos_spec, table_spec],
            out_specs=out_spec,
            compiler_params=params,
        )(pos3d, emb)

    try:
        # Preferred: vectorized jnp.take row gather; constant index_map ->
        # single-buffer the resident table (halves its VMEM footprint).
        # NOTE: this eager build means lowering errors propagate here (they
        # would NOT if wrapped in jax.jit).
        table_spec = pl.BlockSpec(
            (max_seq_len, dim), lambda i: (0, 0), pipeline_mode=pl.Buffered(1)
        )
        return build(table_spec, functools.partial(_take_gather_kernel, scale=scale))
    except Exception:
        # Exact one-hot MXU fallback for Mosaic versions without an in-VMEM
        # dynamic-gather lowering.
        table_spec = pl.BlockSpec((max_seq_len, dim), lambda i: (0, 0))
        return build(
            table_spec,
            functools.partial(_onehot_gather_kernel, scale=scale, n_rows=max_seq_len),
        )


# -----------------------------------------------------------------------------
# Module wrapper (forward pass only).
# -----------------------------------------------------------------------------
class AbsolutePositionalEmbedding:
    """JAX/Pallas port of the PyTorch AbsolutePositionalEmbedding module."""

    def __init__(self, dim, max_seq_len, key, dtype=jnp.float32):
        self.dim = dim
        self.max_seq_len = max_seq_len
        self.scale = dim ** (-0.5)
        # nn.Embedding default init is N(0, 1).
        self.emb = jax.random.normal(key, (max_seq_len, dim), dtype=dtype)
        # Pad the feature dim to a multiple of 128 once so every kernel store
        # is lane-dense; the pad is sliced off after the kernel.
        dim_pad = _round_up(dim, _LANE)
        self._dim_pad = dim_pad
        if dim_pad != dim:
            self._emb_k = jnp.pad(self.emb, ((0, 0), (0, dim_pad - dim)))
        else:
            self._emb_k = self.emb

    def __call__(self, x, pos=None, seq_start_pos=None):
        seq_len = x.shape[1]
        assert seq_len <= self.max_seq_len, (
            f"seq_len {seq_len} exceeds max_seq_len {self.max_seq_len}")

        if pos is None and seq_start_pos is None:
            # Fast path: contiguous arange positions -> streamed copy + scale.
            out = _arange_pos_emb(self._emb_k, seq_len, self.scale)
            return out[:, : self.dim] if self._dim_pad != self.dim else out

        if pos is None:
            pos = jnp.arange(seq_len, dtype=jnp.int32)
        pos = jnp.asarray(pos, dtype=jnp.int32)
        if seq_start_pos is not None:
            start = jnp.asarray(seq_start_pos, dtype=jnp.int32)
            pos = jnp.clip(pos - start[..., None], 0, None)

        out_shape = tuple(pos.shape) + (self.dim,)
        pos_emb = _gather_pos_emb(pos.reshape(-1), self._emb_k, self.scale)
        if self._dim_pad != self.dim:
            pos_emb = pos_emb[:, : self.dim]
        return pos_emb.reshape(out_shape)


if __name__ == "__main__":
    key = jax.random.PRNGKey(0)
    k_emb, k_emb2, k_x = jax.random.split(key, 3)

    # ----- Module 1: lane-dense feature dim -----
    dim, max_seq_len, batch, seq_len = 128, 64, 2, 16
    module = AbsolutePositionalEmbedding(dim, max_seq_len, k_emb)
    x = jax.random.normal(k_x, (batch, seq_len, dim), dtype=jnp.float32)

    # 1) Default path: pos = arange(seq_len) -> (seq_len, dim), pure copy+scale.
    out = jax.block_until_ready(module(x))
    ref = module.emb[:seq_len] * module.scale
    assert out.shape == (seq_len, dim)
    assert jnp.allclose(out, ref, atol=1e-6), "default path mismatch"

    # 2) seq_start_pos path: output (batch, seq_len, dim).
    seq_start = jnp.array([0, 5], dtype=jnp.int32)
    out_b = jax.block_until_ready(module(x, seq_start_pos=seq_start))
    pos_idx = jnp.clip(jnp.arange(seq_len)[None, :] - seq_start[:, None], 0, None)
    ref_b = module.emb[pos_idx] * module.scale
    assert out_b.shape == (batch, seq_len, dim)
    assert jnp.allclose(out_b, ref_b, atol=1e-6), "seq_start_pos path mismatch"

    # 3) Explicit (non-contiguous) pos path.
    pos_custom = jnp.array([3, 0, 7, 7, 63, 1, 2, 5], dtype=jnp.int32)
    out_p = jax.block_until_ready(module(x, pos=pos_custom))
    ref_p = module.emb[pos_custom] * module.scale
    assert out_p.shape == (pos_custom.shape[0], dim)
    assert jnp.allclose(out_p, ref_p, atol=1e-6), "explicit pos path mismatch"

    # ----- Module 2: non-128-multiple feature dim (exercises lane padding) -----
    dim2, max_seq_len2, seq_len2 = 80, 48, 12
    module2 = AbsolutePositionalEmbedding(dim2, max_seq_len2, k_emb2)
    x2 = jnp.zeros((1, seq_len2, dim2), dtype=jnp.float32)

    out2 = jax.block_until_ready(module2(x2))
    ref2 = module2.emb[:seq_len2] * module2.scale
    assert out2.shape == (seq_len2, dim2)
    assert jnp.allclose(out2, ref2, atol=1e-6), "padded-dim default path mismatch"

    pos2 = jnp.array([47, 0, 11, 11, 23, 1], dtype=jnp.int32)
    out2p = jax.block_until_ready(module2(x2, pos=pos2))
    ref2p = module2.emb[pos2] * module2.scale
    assert out2p.shape == (pos2.shape[0], dim2)
    assert jnp.allclose(out2p, ref2p, atol=1e-6), "padded-dim gather path mismatch"

    print("KERNEL_OK")
</pallas_src>

<mosaic_0001>
module attributes {stable_mosaic.version = 11 : i64} {
  func.func @_copy_scale_kernel(%arg0: i32, %arg1: memref<16x128xf32, #tpu.memory_space<vmem>>, %arg2: memref<16x128xf32, #tpu.memory_space<vmem>>) attributes {dimension_semantics = [#tpu.dimension_semantics<parallel>], iteration_bounds = array<i64: 1>, scalar_prefetch = 0 : i64, scratch_operands = 0 : i64, tpu.core_type = #tpu.core_type<tc>, window_params = [{transform_indices = @transform_0, window_bounds = array<i64: 16, 128>}, {transform_indices = @transform_1, window_bounds = array<i64: 16, 128>}]} {
    %c0 = arith.constant 0 : index
    %c0_0 = arith.constant 0 : index
    %0 = vector.load %arg1[%c0, %c0_0] : memref<16x128xf32, #tpu.memory_space<vmem>>, vector<16x128xf32>
    %cst = arith.constant 0.0883883461 : f32
    %1 = vector.broadcast %cst : f32 to vector<16x128xf32>
    %2 = arith.mulf %0, %1 : vector<16x128xf32>
    %c0_1 = arith.constant 0 : index
    %c0_2 = arith.constant 0 : index
    %3 = vector.load %arg2[%c0_1, %c0_2] : memref<16x128xf32, #tpu.memory_space<vmem>>, vector<16x128xf32>
    tpu.vector_store %arg2[%c0_1, %c0_2], %2 {strides = array<i32>} : memref<16x128xf32, #tpu.memory_space<vmem>>, vector<16x128xf32>,
    return
  }
  func.func @transform_0(%arg0: i32) -> (i32, i32) {
    %c0_i32 = arith.constant 0 : i32
    %c0_i32_0 = arith.constant 0 : i32
    return %arg0, %c0_i32 : i32, i32
  }
  func.func @transform_1(%arg0: i32) -> (i32, i32) {
    %c0_i32 = arith.constant 0 : i32
    %c0_i32_0 = arith.constant 0 : i32
    return %arg0, %c0_i32 : i32, i32
  }
}

</mosaic_0001>

<llo_original>
// kernel: tpu_custom_call.1
$region0: #{tpu_custom_call.1}
  #allocation0 [shape = 'u32[]', space=smem, size = 0x4, offset = 0x4, fixed_abs, tag = 'smem constant byte address 0x4 - core index']
  #allocation1 [shape = 'u32[144,128]{1,0:T(1,128)}', space=vmem, size = 0x12000, scoped, tag = 'internal scratch']
  %s0 = inlined_call_operand.hbm [shape: f32[64,128], index: 0, kind: input, shape index: {}]
  %s1 = inlined_call_operand.hbm [shape: f32[16,128], index: 1, kind: output, shape index: {}]
  %s2 = sld [smem:[#allocation0]]
  $region18: #{tpu_custom_call.1} parent=0
    _
  %s4 = ssub.s32 1, %s2
  %s5 = scalar_select 0, %s4, %s2
  $region1: #{tpu_custom_call.1} parent=0
    #allocation2 [shape = 'u8[8192]{0}', space=vmem, size = 0x2000, scoped, tag = 'input window, operand 0, single buffered']
    #allocation3 [shape = 's32[1]{0}', space=sflag, size = 0x4, scoped, tag = 'scoped memory for tpu_custom_call.1']
    #allocation4 [shape = 's32[1]{0}', space=sflag, size = 0x4, scoped, tag = 'scoped memory for tpu_custom_call.1']
    #allocation5 [shape = 'u8[8192]{0}', space=vmem, size = 0x2000, scoped, tag = 'output window, operand 0, single buffered']
    %6 = vsyncpa [#allocation3], 0
    %7 = vsyncpa [#allocation4], 0
    // Predicated region
    $region2: #{tpu_custom_call.1} parent=1 // pred_check
      _
    $region3: #{tpu_custom_call.1} parent=1 // pred_check_branch
      %9 = sbr.rel (0) target = $region5
    $region4: #{tpu_custom_call.1} parent=1 // pred_region
      %s11 = ssub.s32 256, 256
      %12 = vsyncadd [#allocation3], %s11
      %s13 = sshll.u32 [#allocation2], 4
      %s14 = int_to_ptr.vmem [resolvable:$true] %s13
      %19 = dma.hbm_to_vmem [thread:$0]  %s0, 256, %s14, [#allocation3], 128, 128, 8
    $region5: #{tpu_custom_call.1} parent=1 // pred_fallthru
      _
    // Predicated region
    $region6: #{tpu_custom_call.1} parent=1 // pred_check
      _
    $region7: #{tpu_custom_call.1} parent=1 // pred_check_branch
      %21 = sbr.rel (0) target = $region9
    $region8: #{tpu_custom_call.1} parent=1 // pred_region
      %22 = dma.done [#allocation3], 256
    $region9: #{tpu_custom_call.1} parent=1 // pred_fallthru
      _
    %v23 = vld [vmem:[#allocation2] sm:$0xff]
    %v24 = vld [vmem:[#allocation2 + $0x8] sm:$0xff]
    %v25 = vmul.f32 %v23, 0.088388346
    %v26 = vmul.f32 %v24, 0.088388346
    %27 = vst [vmem:[#allocation5] sm:$0xff] %v25
    %28 = vst [vmem:[#allocation5 + $0x8] sm:$0xff] %v26
    // Predicated region
    $region10: #{tpu_custom_call.1} parent=1 // pred_check
      _
    $region11: #{tpu_custom_call.1} parent=1 // pred_check_branch
      %30 = sbr.rel (0) target = $region13
    $region12: #{tpu_custom_call.1} parent=1 // pred_region
      %s32 = ssub.s32 256, 256
      %33 = vsyncadd [#allocation4], %s32
      %s34 = sshll.u32 [#allocation5], 4
      %s35 = int_to_ptr.vmem [resolvable:$true] %s34
      %40 = dma.vmem_to_hbm [thread:$0]  %s35, 256, %s1, [#allocation4], 128, 128, 8
    $region13: #{tpu_custom_call.1} parent=1 // pred_fallthru
      _
    // Predicated region
    $region14: #{tpu_custom_call.1} parent=1 // pred_check
      _
    $region15: #{tpu_custom_call.1} parent=1 // pred_check_branch
      %42 = sbr.rel (0) target = $region17
    $region16: #{tpu_custom_call.1} parent=1 // pred_region
      %43 = dma.done [#allocation4], 256
    $region17: #{tpu_custom_call.1} parent=1 // pred_fallthru
      _
    %44 = vsyncpa [#allocation3], 1
    %45 = vsyncpa [#allocation4], 1

</llo_original>
